<compile_context>
chip_gen: v6e
topology: v6e:2x2x1
jax: 0.10.0
libtpu: 0.0.40
codegen_flags: <defaults>
</compile_context>

<pallas_src>
import numpy as np
import jax
import jax.numpy as jnp
from jax.experimental import pallas as pl
from jax.experimental.pallas import tpu as pltpu


# ---------------------------- Pallas kernel ----------------------------

def _concat_kernel(x_ref, a_ref, out_ref):
    """One (HW-tile, batch-block) grid step: pure streaming concat.

    x_ref   : (Bblk, C,   tHW) f32 -- x slab for this batch block / HW tile
    a_ref   : (K,    tHW)      f32 -- batch-invariant upsampled alpha slab
    out_ref : (Bblk, C+K, tHW) f32
    """
    Bblk, _, tHW = x_ref.shape
    K = a_ref.shape[0]
    # Replicate the shared alpha slab across the batch sub-block and assemble
    # the full output block in-register -> one aligned full-block store
    # (avoids a sublane-misaligned store starting at row C).
    a_b = jnp.broadcast_to(a_ref[...][None, :, :], (Bblk, K, tHW))
    out_ref[...] = jnp.concatenate(
        [x_ref[...], a_b], axis=1).astype(out_ref.dtype)


# ---------------------- static (trace-time) helpers ---------------------

def _conv2_scatter_indices(K, in_hw=4, out_hw=10, kk=6, stride=2, pad=1):
    """Static index arrays expressing ConvTranspose2d(K,K,6,s=2,p=1) on a
    (K,4,4) map as a (K*16, K*100) matrix built by scatter-add."""
    rows, cols, ci_l, co_l, kh_l, kw_l = [], [], [], [], [], []
    for ci in range(K):
        for co in range(K):
            for ih in range(in_hw):
                for iw in range(in_hw):
                    for kh in range(kk):
                        for kw in range(kk):
                            oh = ih * stride - pad + kh
                            ow = iw * stride - pad + kw
                            if 0 <= oh < out_hw and 0 <= ow < out_hw:
                                rows.append(ci * in_hw * in_hw + ih * in_hw + iw)
                                cols.append(co * out_hw * out_hw + oh * out_hw + ow)
                                ci_l.append(ci)
                                co_l.append(co)
                                kh_l.append(kh)
                                kw_l.append(kw)
    return (np.asarray(rows), np.asarray(cols), np.asarray(ci_l),
            np.asarray(co_l), np.asarray(kh_l), np.asarray(kw_l))


def _nearest_src_table(H, W, in_hw=10):
    """PyTorch 'nearest' (floor(dst*in/out)) flat source index per (h,w)."""
    hh = (np.arange(H) * in_hw) // H
    ww = (np.arange(W) * in_hw) // W
    return (hh[:, None] * in_hw + ww[None, :]).reshape(H * W).astype(np.int32)


def _pick_hw_tile(hw_pad):
    """Largest lane-dense tile (multiple of 128) dividing the padded HW."""
    for t in (8192, 4096, 2048, 1024, 512, 256, 128):
        if hw_pad % t == 0:
            return t
    return 128  # unreachable: hw_pad is always a multiple of 128


def _pick_batch_block(b, C, K, tHW, budget_bytes=8 * 1024 * 1024):
    """Largest batch sub-block dividing b whose double-buffered blocks fit."""
    for Bblk in (8, 4, 2, 1):
        if b % Bblk:
            continue
        per_step = (Bblk * C + K + Bblk * (C + K)) * tHW * 4 * 2
        if per_step <= budget_bytes:
            return Bblk
    return 1


# ------------------------------ wrapper --------------------------------

def upsampler_forward(x, alpha, w1, w2):
    """x: (b, C, H, W) f32, alpha: (K,), w1: (K,K,4,4), w2: (K,K,6,6)."""
    b, C, H, W = x.shape
    K = alpha.shape[0]
    HW = H * W

    # --- batch-invariant alpha branch (runs once, outside the kernel) -----
    # ConvTranspose2d(K,K,4,s=1,p=0) on a 1x1 input == (1,K) @ (K, K*16)
    w1_flat = w1.reshape(K, K * 4 * 4)
    y1 = jnp.maximum(jnp.dot(alpha.reshape(1, K), w1_flat), 0.0)       # (1, K*16)
    # ConvTranspose2d(K,K,6,s=2,p=1) on (K,4,4) == (1,K*16) @ (K*16, K*100)
    rows, cols, g_ci, g_co, g_kh, g_kw = _conv2_scatter_indices(K)
    vals = w2[g_ci, g_co, g_kh, g_kw]
    m2 = jnp.zeros((K * 16, K * 100), jnp.float32).at[rows, cols].add(vals)
    a10 = jnp.maximum(jnp.dot(y1, m2), 0.0).reshape(K, 100)            # (K, 100)

    # Nearest-neighbor upsample hoisted out of the kernel: tiny gather once.
    src = jnp.asarray(_nearest_src_table(H, W))                        # (HW,)
    a_full = jnp.take(a10, src, axis=1).astype(jnp.float32)            # (K, HW)

    # --- lane alignment: pad HW up to a multiple of 128, slice afterwards --
    HW_pad = ((HW + 127) // 128) * 128
    x_flat = x.reshape(b, C, HW).astype(jnp.float32)
    if HW_pad != HW:
        pad = HW_pad - HW
        x_flat = jnp.pad(x_flat, ((0, 0), (0, 0), (0, pad)))
        a_full = jnp.pad(a_full, ((0, 0), (0, pad)))

    tHW = _pick_hw_tile(HW_pad)
    n_hw = HW_pad // tHW
    Bblk = _pick_batch_block(b, C, K, tHW)
    n_b = b // Bblk

    out = pl.pallas_call(
        _concat_kernel,
        out_shape=jax.ShapeDtypeStruct((b, C + K, HW_pad), jnp.float32),
        grid=(n_hw, n_b),                       # batch innermost: alpha slab
        in_specs=[                              # block index is constant there
            pl.BlockSpec((Bblk, C, tHW), lambda ti, bi: (bi, 0, ti)),
            pl.BlockSpec((K, tHW), lambda ti, bi: (0, ti)),
        ],
        out_specs=pl.BlockSpec((Bblk, C + K, tHW), lambda ti, bi: (bi, 0, ti)),
        compiler_params=pltpu.CompilerParams(
            dimension_semantics=("parallel", "parallel")),
    )(x_flat, a_full)

    out = out[:, :, :HW].reshape(b, C + K, H, W)
    return out


# ---------- pure-numpy reference (mirrors the PyTorch module) ----------

def _reference_forward(x, alpha, w1, w2, H, W):
    x, alpha = np.asarray(x), np.asarray(alpha)
    w1, w2 = np.asarray(w1), np.asarray(w2)
    b = x.shape[0]
    K = alpha.shape[0]
    a = np.tile(alpha[None, :], (b, 1)).reshape(b, K, 1, 1).astype(np.float32)

    def convT(inp, w, stride, pad):
        bb, ci_n, ih_n, iw_n = inp.shape
        _, co_n, kh_n, kw_n = w.shape
        oh_n = (ih_n - 1) * stride - 2 * pad + kh_n
        ow_n = (iw_n - 1) * stride - 2 * pad + kw_n
        out = np.zeros((bb, co_n, oh_n, ow_n), np.float32)
        for bi in range(bb):
            for ci in range(ci_n):
                for co in range(co_n):
                    for ih in range(ih_n):
                        for iw in range(iw_n):
                            for kh in range(kh_n):
                                for kw in range(kw_n):
                                    oh = ih * stride - pad + kh
                                    ow = iw * stride - pad + kw
                                    if 0 <= oh < oh_n and 0 <= ow < ow_n:
                                        out[bi, co, oh, ow] += (
                                            inp[bi, ci, ih, iw] * w[ci, co, kh, kw])
        return out

    a = np.maximum(convT(a, w1, 1, 0), 0.0)
    a = np.maximum(convT(a, w2, 2, 1), 0.0)
    ih_idx = (np.arange(H) * a.shape[2]) // H
    iw_idx = (np.arange(W) * a.shape[3]) // W
    a = a[:, :, ih_idx][:, :, :, iw_idx]
    return np.concatenate([np.asarray(x, np.float32), a], axis=1)


if __name__ == "__main__":
    b, C, H, W = 2, 4, 16, 16   # input_dim = (C, H, W)
    K = 4                       # number of objectives / rays

    key = jax.random.PRNGKey(0)
    k1, k2, k3, k4 = jax.random.split(key, 4)
    x = jax.random.normal(k1, (b, C, H, W), jnp.float32)
    alpha = jax.random.uniform(k2, (K,), jnp.float32)
    alpha = alpha / jnp.sum(alpha)                       # a sampled ray
    w1 = jax.random.normal(k3, (K, K, 4, 4), jnp.float32) * 0.25
    w2 = jax.random.normal(k4, (K, K, 6, 6), jnp.float32) * 0.10

    out = upsampler_forward(x, alpha, w1, w2)
    out = jax.block_until_ready(out)

    ref = _reference_forward(x, alpha, w1, w2, H, W)
    np.testing.assert_allclose(np.asarray(out), ref, rtol=1e-4, atol=1e-4)
    print("KERNEL_OK")
</pallas_src>

<mosaic_0001>
module attributes {stable_mosaic.version = 11 : i64} {
  func.func @_concat_kernel(%arg0: i32, %arg1: i32, %arg2: memref<2x4x256xf32, #tpu.memory_space<vmem>>, %arg3: memref<4x256xf32, #tpu.memory_space<vmem>>, %arg4: memref<2x8x256xf32, #tpu.memory_space<vmem>>) attributes {dimension_semantics = [#tpu.dimension_semantics<parallel>, #tpu.dimension_semantics<parallel>], iteration_bounds = array<i64: 1, 1>, scalar_prefetch = 0 : i64, scratch_operands = 0 : i64, tpu.core_type = #tpu.core_type<tc>, window_params = [{transform_indices = @transform_0, window_bounds = array<i64: 2, 4, 256>}, {transform_indices = @transform_1, window_bounds = array<i64: 4, 256>}, {transform_indices = @transform_2, window_bounds = array<i64: 2, 8, 256>}]} {
    %c0 = arith.constant 0 : index
    %c0_0 = arith.constant 0 : index
    %0 = vector.load %arg3[%c0, %c0_0] : memref<4x256xf32, #tpu.memory_space<vmem>>, vector<4x256xf32>
    %1 = vector.shape_cast %0 : vector<4x256xf32> to vector<1x4x256xf32>
    %2 = vector.shape_cast %1 : vector<1x4x256xf32> to vector<1x4x256xf32>
    %3 = vector.broadcast %2 : vector<1x4x256xf32> to vector<2x4x256xf32>
    %c0_1 = arith.constant 0 : index
    %c0_2 = arith.constant 0 : index
    %c0_3 = arith.constant 0 : index
    %4 = vector.load %arg2[%c0_1, %c0_2, %c0_3] : memref<2x4x256xf32, #tpu.memory_space<vmem>>, vector<2x4x256xf32>
    %5 = tpu.concatenate %4, %3 in 1 : vector<2x4x256xf32>, vector<2x4x256xf32> -> vector<2x8x256xf32>
    %c0_4 = arith.constant 0 : index
    %c0_5 = arith.constant 0 : index
    %c0_6 = arith.constant 0 : index
    %6 = vector.load %arg4[%c0_4, %c0_5, %c0_6] : memref<2x8x256xf32, #tpu.memory_space<vmem>>, vector<2x8x256xf32>
    tpu.vector_store %arg4[%c0_4, %c0_5, %c0_6], %5 {strides = array<i32>} : memref<2x8x256xf32, #tpu.memory_space<vmem>>, vector<2x8x256xf32>,
    return
  }
  func.func @transform_0(%arg0: i32, %arg1: i32) -> (i32, i32, i32) {
    %c0_i32 = arith.constant 0 : i32
    %c0_i32_0 = arith.constant 0 : i32
    return %arg1, %c0_i32, %arg0 : i32, i32, i32
  }
  func.func @transform_1(%arg0: i32, %arg1: i32) -> (i32, i32) {
    %c0_i32 = arith.constant 0 : i32
    %c0_i32_0 = arith.constant 0 : i32
    return %c0_i32, %arg0 : i32, i32
  }
  func.func @transform_2(%arg0: i32, %arg1: i32) -> (i32, i32, i32) {
    %c0_i32 = arith.constant 0 : i32
    %c0_i32_0 = arith.constant 0 : i32
    return %arg1, %c0_i32, %arg0 : i32, i32, i32
  }
}

</mosaic_0001>

<llo_original>
// kernel: tpu_custom_call.1
$region0: #{tpu_custom_call.1}
  #allocation0 [shape = 'u32[]', space=smem, size = 0x4, offset = 0x4, fixed_abs, tag = 'smem constant byte address 0x4 - core index']
  #allocation1 [shape = 'u32[144,128]{1,0:T(1,128)}', space=vmem, size = 0x12000, scoped, tag = 'internal scratch']
  %s0 = inlined_call_operand.hbm [shape: f32[2,4,256], index: 0, kind: input, shape index: {}]
  %s1 = inlined_call_operand.hbm [shape: f32[4,256], index: 1, kind: input, shape index: {}]
  %s2 = inlined_call_operand.hbm [shape: f32[2,8,256], index: 2, kind: output, shape index: {}]
  %s3 = sld [smem:[#allocation0]]
  $region26: #{tpu_custom_call.1} parent=0
    _
  %s5 = ssub.s32 1, %s3
  %s6 = scalar_select 0, %s5, %s3
  $region1: #{tpu_custom_call.1} parent=0
    #allocation2 [shape = 'u8[8192]{0}', space=vmem, size = 0x2000, scoped, tag = 'input window, operand 0, single buffered']
    #allocation3 [shape = 's32[1]{0}', space=sflag, size = 0x4, scoped, tag = 'scoped memory for tpu_custom_call.1']
    #allocation4 [shape = 's32[1]{0}', space=sflag, size = 0x4, scoped, tag = 'scoped memory for tpu_custom_call.1']
    #allocation5 [shape = 'u8[4096]{0}', space=vmem, size = 0x1000, scoped, tag = 'input window, operand 1, single buffered']
    #allocation6 [shape = 's32[1]{0}', space=sflag, size = 0x4, scoped, tag = 'scoped memory for tpu_custom_call.1']
    #allocation7 [shape = 'u8[16384]{0}', space=vmem, size = 0x4000, scoped, tag = 'output window, operand 0, single buffered']
    %7 = vsyncpa [#allocation3], 0
    %8 = vsyncpa [#allocation6], 0
    %9 = vsyncpa [#allocation4], 0
    // Predicated region
    $region2: #{tpu_custom_call.1} parent=1 // pred_check
      _
    $region3: #{tpu_custom_call.1} parent=1 // pred_check_branch
      %11 = sbr.rel (0) target = $region5
    $region4: #{tpu_custom_call.1} parent=1 // pred_region
      %s13 = ssub.s32 256, 256
      %14 = vsyncadd [#allocation3], %s13
      %s15 = sshll.u32 [#allocation2], 4
      %s16 = int_to_ptr.vmem [resolvable:$true] %s15
      %21 = dma.hbm_to_vmem [thread:$0]  %s0, 256, %s16, [#allocation3], 128, 128, 8
    $region5: #{tpu_custom_call.1} parent=1 // pred_fallthru
      _
    // Predicated region
    $region6: #{tpu_custom_call.1} parent=1 // pred_check
      _
    $region7: #{tpu_custom_call.1} parent=1 // pred_check_branch
      %23 = sbr.rel (0) target = $region9
    $region8: #{tpu_custom_call.1} parent=1 // pred_region
      %s25 = ssub.s32 128, 128
      %26 = vsyncadd [#allocation6], %s25
      %s28 = sshll.u32 [#allocation5], 4
      %s29 = int_to_ptr.vmem [resolvable:$true] %s28
      %31 = dma.hbm_to_vmem [thread:$0]  %s1, 128, %s29, [#allocation6]
    $region9: #{tpu_custom_call.1} parent=1 // pred_fallthru
      _
    // Predicated region
    $region10: #{tpu_custom_call.1} parent=1 // pred_check
      _
    $region11: #{tpu_custom_call.1} parent=1 // pred_check_branch
      %33 = sbr.rel (0) target = $region13
    $region12: #{tpu_custom_call.1} parent=1 // pred_region
      %34 = dma.done [#allocation3], 256
    $region13: #{tpu_custom_call.1} parent=1 // pred_fallthru
      _
    // Predicated region
    $region14: #{tpu_custom_call.1} parent=1 // pred_check
      _
    $region15: #{tpu_custom_call.1} parent=1 // pred_check_branch
      %36 = sbr.rel (0) target = $region17
    $region16: #{tpu_custom_call.1} parent=1 // pred_region
      %37 = dma.done [#allocation6], 128
    $region17: #{tpu_custom_call.1} parent=1 // pred_fallthru
      _
    %v38 = vld [vmem:[#allocation5] sm:$0xff]
    %v39 = vld [vmem:[#allocation2] sm:$0xff]
    %v40 = vld [vmem:[#allocation2 + $0x8] sm:$0xff]
    %v43 = vcombine.high %v39, %v39
    %v44 = vcombine.high %v40, %v40
    %v48 = vcombine.low %v38, %v38
    %vm50 = vcmask 1043456
    %v51 = vsel %vm50, %v39, %v48
    %v52 = vsel %vm50, %v43, %v38
    %v53 = vsel %vm50, %v40, %v48
    %v54 = vsel %vm50, %v44, %v38
    %55 = vst [vmem:[#allocation7] sm:$0xff] %v51
    %56 = vst [vmem:[#allocation7 + $0x8] sm:$0xff] %v52
    %57 = vst [vmem:[#allocation7 + $0x10] sm:$0xff] %v53
    %58 = vst [vmem:[#allocation7 + $0x18] sm:$0xff] %v54
    // Predicated region
    $region18: #{tpu_custom_call.1} parent=1 // pred_check
      _
    $region19: #{tpu_custom_call.1} parent=1 // pred_check_branch
      %60 = sbr.rel (0) target = $region21
    $region20: #{tpu_custom_call.1} parent=1 // pred_region
      %s62 = ssub.s32 512, 512
      %63 = vsyncadd [#allocation4], %s62
      %s64 = sshll.u32 [#allocation7], 4
      %s65 = int_to_ptr.vmem [resolvable:$true] %s64
      %70 = dma.vmem_to_hbm [thread:$0]  %s65, 512, %s2, [#allocation4], 256, 256, 16
    $region21: #{tpu_custom_call.1} parent=1 // pred_fallthru
      _
    // Predicated region
    $region22: #{tpu_custom_call.1} parent=1 // pred_check
      _
    $region23: #{tpu_custom_call.1} parent=1 // pred_check_branch
      %72 = sbr.rel (0) target = $region25
    $region24: #{tpu_custom_call.1} parent=1 // pred_region
      %73 = dma.done [#allocation4], 512
    $region25: #{tpu_custom_call.1} parent=1 // pred_fallthru
      _
    %74 = vsyncpa [#allocation3], 1
    %75 = vsyncpa [#allocation6], 1
    %76 = vsyncpa [#allocation4], 1

</llo_original>
